<compile_context>
chip_gen: v7x
topology: tpu7x:2x2x1
jax: 0.10.0
libtpu: 0.0.40
codegen_flags: <defaults>
</compile_context>

<pallas_src>
import functools

import jax
import jax.numpy as jnp
from jax import lax
from jax.experimental import pallas as pl
from jax.experimental.pallas import tpu as pltpu

_EPS = 1e-12  # F.normalize default eps


def _round_up(x, m):
    return ((x + m - 1) // m) * m


# ----------------------------------------------------------------------------
# Fused kernel: (x @ w) row-tile, L2-normalized; null embed normalized into a
# dedicated padded row of the same output (single launch, single output).
# ----------------------------------------------------------------------------
def _fused_text_null_kernel(x_ref, w_ref, null_ref, o_ref, *,
                            null_tile, null_row):
    # bf16 operands -> MXU, f32 accumulation.
    y = jnp.dot(x_ref[...], w_ref[...], preferred_element_type=jnp.float32)
    # l2-normalize: x / max(||x||, eps)  ==  x * rsqrt(max(sumsq, eps^2))
    inv = lax.rsqrt(jnp.maximum(jnp.sum(y * y, axis=-1, keepdims=True),
                                _EPS * _EPS))
    o_ref[...] = (y * inv).astype(o_ref.dtype)

    # Null embedding: normalized once, written into its reserved row of the
    # output tile that owns that row (the corresponding x row is zero-padding).
    @pl.when(pl.program_id(0) == null_tile)
    def _():
        nv = null_ref[...].astype(jnp.float32)
        ninv = lax.rsqrt(jnp.maximum(jnp.sum(nv * nv, axis=-1, keepdims=True),
                                     _EPS * _EPS))
        o_ref[pl.ds(null_row, 1), :] = (nv * ninv).astype(o_ref.dtype)


def fused_text_null_l2norm(token_feats, proj, null_embed, *, tile_n=128):
    """Returns (l2norm(token_feats @ proj), l2norm(null_embed)) via one kernel."""
    n, d_in = token_feats.shape
    d_in_w, d_out = proj.shape
    assert d_in == d_in_w
    assert null_embed.shape == (1, d_out)

    # Lane/sublane-friendly padding (zeros do not change the matmul or norms).
    d_in_pad = _round_up(d_in, 128)
    d_out_pad = _round_up(d_out, 128)
    n_total = n + 1                       # +1 reserved row for the null embed
    n_pad = _round_up(n_total, tile_n)
    grid = (n_pad // tile_n,)
    null_tile = n // tile_n               # tile that owns the null row
    null_row = n % tile_n                 # row index inside that tile

    # bf16 operands halve HBM/DMA bytes and hit the bf16-native MXU path;
    # accumulation and the norm epilogue stay in f32.
    x = jnp.pad(token_feats,
                ((0, n_pad - n), (0, d_in_pad - d_in))).astype(jnp.bfloat16)
    w = jnp.pad(proj,
                ((0, d_in_pad - d_in), (0, d_out_pad - d_out))).astype(jnp.bfloat16)
    null_p = jnp.pad(null_embed,
                     ((0, 0), (0, d_out_pad - d_out))).astype(jnp.float32)

    kernel = functools.partial(_fused_text_null_kernel,
                               null_tile=null_tile, null_row=null_row)

    out = pl.pallas_call(
        kernel,
        out_shape=jax.ShapeDtypeStruct((n_pad, d_out_pad), jnp.float32),
        grid_spec=pltpu.PrefetchScalarGridSpec(
            num_scalar_prefetch=0,
            grid=grid,
            in_specs=[
                pl.BlockSpec((tile_n, d_in_pad), lambda i: (i, 0)),
                # Weight block is constant across the grid (index_map -> (0,0));
                # small here, so default buffering is fine.  For very large
                # weights, switch to pipeline_mode=pl.Buffered(1) to halve its
                # VMEM footprint (most relevant on v7x's 64 MiB VMEM).
                pl.BlockSpec((d_in_pad, d_out_pad), lambda i: (0, 0)),
                pl.BlockSpec((1, d_out_pad), lambda i: (0, 0)),
            ],
            out_specs=pl.BlockSpec((tile_n, d_out_pad), lambda i: (i, 0)),
        ),
        compiler_params=pltpu.CompilerParams(
            dimension_semantics=("parallel",),
            vmem_limit_bytes=32 * 1024 * 1024,
        ),
    )(x, w, null_p)

    text_embed = out[:n, :d_out]
    null_out = out[n:n + 1, :d_out]
    return text_embed, null_out


# ----------------------------------------------------------------------------
# Synthetic wrapped model (category head) + OpenPanopticInference wrapper
# ----------------------------------------------------------------------------
class SyntheticCategoryHead:
    """Stands in for model.category_head: label tokens -> text embeddings."""

    def __init__(self, key, num_labels, hidden, embed_dim):
        k1, k2, k3 = jax.random.split(key, 3)
        self.token_feats = jax.random.normal(k1, (num_labels, hidden), jnp.float32)
        self.proj = jax.random.normal(k2, (hidden, embed_dim), jnp.float32) * 0.1
        self.null_embed = jax.random.normal(k3, (1, embed_dim), jnp.float32)

    def forward_text(self, labels):
        # text_embed = token_feats @ proj  (computed inside the fused Pallas
        # kernel together with the subsequent L2 normalization).
        return {
            "token_feats": self.token_feats,
            "proj": self.proj,
            "null_embed": self.null_embed,
            "labels": labels,
        }


class OpenPanopticInference:
    """JAX/Pallas port of the ODISE OpenPanopticInference wrapper."""

    def __init__(self, model, labels, metadata=None,
                 semantic_on=True, instance_on=True, panoptic_on=True,
                 test_topk_per_image=100):
        self.model = model
        self.labels = labels
        self.metadata = metadata
        self.semantic_on = semantic_on
        self.instance_on = instance_on
        self.panoptic_on = panoptic_on
        self.test_topk_per_image = test_topk_per_image

    @property
    def num_classes(self):
        return len(self.labels)

    def forward_text(self, labels):
        outputs = self.model.forward_text(labels)
        # F.normalize(text_embed, dim=-1) and F.normalize(null_embed, dim=-1),
        # fused with the category-head projection in a single Pallas kernel.
        text_embed, null_embed = fused_text_null_l2norm(
            outputs["token_feats"], outputs["proj"], outputs["null_embed"]
        )
        return {
            "text_embed": text_embed,
            "null_embed": null_embed,
            "labels": outputs["labels"],
        }

    # TODO(synk): forward()/forward_feature() only swap open_state_dict and
    # delegate to the arbitrary wrapped segmentation model; no self-contained
    # compute to port.


# ----------------------------------------------------------------------------
# Reference (plain JAX, same bf16 operand semantics) for a sanity check
# ----------------------------------------------------------------------------
def _ref_forward_text(head):
    xb = head.token_feats.astype(jnp.bfloat16).astype(jnp.float32)
    wb = head.proj.astype(jnp.bfloat16).astype(jnp.float32)
    y = xb @ wb
    te = y / jnp.maximum(jnp.linalg.norm(y, axis=-1, keepdims=True), _EPS)
    ne = head.null_embed / jnp.maximum(
        jnp.linalg.norm(head.null_embed, axis=-1, keepdims=True), _EPS
    )
    return te, ne


if __name__ == "__main__":
    key = jax.random.PRNGKey(0)

    num_labels = 150   # realistic (ADE-like) vocab size; NOT a tile multiple
    hidden = 256       # category-head hidden dim (lane-aligned)
    embed_dim = 256    # text embedding dim (lane-aligned)

    labels = [f"class_{i}" for i in range(num_labels)]
    head = SyntheticCategoryHead(key, num_labels, hidden, embed_dim)
    wrapper = OpenPanopticInference(head, labels)

    out = wrapper.forward_text(labels)
    text_embed = jax.block_until_ready(out["text_embed"])
    null_embed = jax.block_until_ready(out["null_embed"])

    ref_te, ref_ne = _ref_forward_text(head)
    assert text_embed.shape == (num_labels, embed_dim)
    assert null_embed.shape == (1, embed_dim)
    assert jnp.allclose(text_embed, ref_te, atol=1e-4)
    assert jnp.allclose(null_embed, ref_ne, atol=1e-5)
    # normalized rows have unit norm
    assert jnp.allclose(jnp.linalg.norm(text_embed, axis=-1), 1.0, atol=1e-4)
    assert jnp.allclose(jnp.linalg.norm(null_embed, axis=-1), 1.0, atol=1e-5)

    print("KERNEL_OK")
</pallas_src>

<mosaic_0001>
module attributes {stable_mosaic.version = 11 : i64} {
  func.func @_fused_text_null_kernel(%arg0: i32, %arg1: memref<128x256xbf16, #tpu.memory_space<vmem>>, %arg2: memref<256x256xbf16, #tpu.memory_space<vmem>>, %arg3: memref<1x256xf32, #tpu.memory_space<vmem>>, %arg4: memref<128x256xf32, #tpu.memory_space<vmem>>) attributes {dimension_semantics = [#tpu.dimension_semantics<parallel>], iteration_bounds = array<i64: 2>, scalar_prefetch = 0 : i64, scratch_operands = 0 : i64, tpu.core_type = #tpu.core_type<tc>, window_params = [{transform_indices = @transform_0, window_bounds = array<i64: 128, 256>}, {pipeline_mode = #tpu.pipeline_mode<synchronous>, transform_indices = @transform_1, window_bounds = array<i64: 256, 256>}, {pipeline_mode = #tpu.pipeline_mode<synchronous>, transform_indices = @transform_2, window_bounds = array<i64: 1, 256>}, {transform_indices = @transform_3, window_bounds = array<i64: 128, 256>}]} {
    %c0 = arith.constant 0 : index
    %c0_0 = arith.constant 0 : index
    %0 = vector.load %arg1[%c0, %c0_0] : memref<128x256xbf16, #tpu.memory_space<vmem>>, vector<128x256xbf16>
    %c0_1 = arith.constant 0 : index
    %c0_2 = arith.constant 0 : index
    %1 = vector.load %arg2[%c0_1, %c0_2] : memref<256x256xbf16, #tpu.memory_space<vmem>>, vector<256x256xbf16>
    %cst = arith.constant dense<0.000000e+00> : vector<128x256xf32>
    %2 = tpu.matmul %0, %1, %cst {dimension_numbers = #tpu.dot_dimension_numbers<[1], [0], [0], [1], [0, 0, 1, 1], [], []>} : vector<128x256xbf16>, vector<256x256xbf16>, vector<128x256xf32> -> vector<128x256xf32>
    %3 = arith.mulf %2, %2 : vector<128x256xf32>
    %cst_3 = arith.constant dense<0.000000e+00> : vector<128xf32>
    %4 = vector.multi_reduction <add>, %3, %cst_3 [1] : vector<128x256xf32> to vector<128xf32>
    %5 = vector.shape_cast %4 : vector<128xf32> to vector<128x1xf32>
    %cst_4 = arith.constant 1.000000e-24 : f32
    %6 = vector.broadcast %cst_4 : f32 to vector<128x1xf32>
    %7 = arith.maximumf %5, %6 : vector<128x1xf32>
    %8 = math.rsqrt %7 : vector<128x1xf32>
    %9 = vector.broadcast %8 : vector<128x1xf32> to vector<128x256xf32>
    %10 = arith.mulf %2, %9 : vector<128x256xf32>
    %c0_5 = arith.constant 0 : index
    %c0_6 = arith.constant 0 : index
    %11 = vector.load %arg4[%c0_5, %c0_6] : memref<128x256xf32, #tpu.memory_space<vmem>>, vector<128x256xf32>
    tpu.vector_store %arg4[%c0_5, %c0_6], %10 {strides = array<i32>} : memref<128x256xf32, #tpu.memory_space<vmem>>, vector<128x256xf32>,
    %c1_i32 = arith.constant 1 : i32
    %12 = arith.cmpi eq, %arg0, %c1_i32 : i32
    %13 = arith.extui %12 : i1 to i32
    %c0_i32 = arith.constant 0 : i32
    %14 = arith.cmpi ne, %13, %c0_i32 : i32
    scf.if %14 {
      %c0_7 = arith.constant 0 : index
      %c0_8 = arith.constant 0 : index
      %15 = vector.load %arg3[%c0_7, %c0_8] : memref<1x256xf32, #tpu.memory_space<vmem>>, vector<1x256xf32>
      %16 = arith.mulf %15, %15 : vector<1x256xf32>
      %cst_9 = arith.constant dense<0.000000e+00> : vector<1xf32>
      %17 = vector.multi_reduction <add>, %16, %cst_9 [1] : vector<1x256xf32> to vector<1xf32>
      %18 = vector.shape_cast %17 : vector<1xf32> to vector<1x1xf32>
      %cst_10 = arith.constant 1.000000e-24 : f32
      %19 = vector.broadcast %cst_10 : f32 to vector<1x1xf32>
      %20 = arith.maximumf %18, %19 : vector<1x1xf32>
      %21 = math.rsqrt %20 : vector<1x1xf32>
      %22 = vector.broadcast %21 : vector<1x1xf32> to vector<1x256xf32>
      %23 = arith.mulf %15, %22 : vector<1x256xf32>
      %c22 = arith.constant 22 : index
      %c0_11 = arith.constant 0 : index
      %24 = vector.load %arg4[%c22, %c0_11] : memref<128x256xf32, #tpu.memory_space<vmem>>, vector<1x256xf32>
      tpu.vector_store %arg4[%c22, %c0_11], %23 {strides = array<i32>} : memref<128x256xf32, #tpu.memory_space<vmem>>, vector<1x256xf32>,
    } else {
    }
    return
  }
  func.func @transform_0(%arg0: i32) -> (i32, i32) {
    %c0_i32 = arith.constant 0 : i32
    %c0_i32_0 = arith.constant 0 : i32
    return %arg0, %c0_i32 : i32, i32
  }
  func.func @transform_1(%arg0: i32) -> (i32, i32) {
    %c0_i32 = arith.constant 0 : i32
    %c0_i32_0 = arith.constant 0 : i32
    %c0_i32_1 = arith.constant 0 : i32
    return %c0_i32, %c0_i32_0 : i32, i32
  }
  func.func @transform_2(%arg0: i32) -> (i32, i32) {
    %c0_i32 = arith.constant 0 : i32
    %c0_i32_0 = arith.constant 0 : i32
    %c0_i32_1 = arith.constant 0 : i32
    return %c0_i32, %c0_i32_0 : i32, i32
  }
  func.func @transform_3(%arg0: i32) -> (i32, i32) {
    %c0_i32 = arith.constant 0 : i32
    %c0_i32_0 = arith.constant 0 : i32
    return %arg0, %c0_i32 : i32, i32
  }
}

</mosaic_0001>

<llo_original>
// kernel: tpu_custom_call.1
$region0: #{tpu_custom_call.1}
  #allocation0 [shape = 'u32[]', space=smem, size = 0x4, offset = 0x4, fixed_abs, tag = 'smem constant byte address 0x4 - core index']
  #allocation1 [shape = 'u32[144,128]{1,0:T(1,128)}', space=vmem, size = 0x12000, scoped, tag = 'internal scratch']
  %s0 = inlined_call_operand.hbm [shape: bf16[256,256], index: 0, kind: input, shape index: {}]
  %s1 = inlined_call_operand.hbm [shape: bf16[256,256], index: 1, kind: input, shape index: {}]
  %s2 = inlined_call_operand.vmem [shape: f32[1,256], index: 2, kind: input, shape index: {}]
  %s3 = inlined_call_operand.hbm [shape: f32[256,256], index: 3, kind: output, shape index: {}]
  %s4 = sld [smem:[#allocation0]]
  $region57: #{tpu_custom_call.1} parent=0
    _
  %s6 = ssub.s32 1, %s4
  %s7 = scalar_select 0, %s6, %s4
  $region1: #{tpu_custom_call.1} parent=0
    #allocation2 [shape = 'u8[131072]{0}', space=vmem, size = 0x20000, scoped, tag = 'input window, operand 0']
    #allocation3 [shape = 's32[2]{0}', space=sflag, size = 0x8, scoped, tag = 'scoped memory for tpu_custom_call.1']
    #allocation4 [shape = 's32[2]{0}', space=sflag, size = 0x8, scoped, tag = 'scoped memory for tpu_custom_call.1']
    #allocation5 [shape = 'u8[131072]{0}', space=vmem, size = 0x20000, scoped, tag = 'input window, operand 1, single buffered']
    #allocation6 [shape = 's32[1]{0}', space=sflag, size = 0x4, scoped, tag = 'scoped memory for tpu_custom_call.1']
    #allocation7 [shape = 'u8[262144]{0}', space=vmem, size = 0x40000, scoped, tag = 'output window, operand 0']
    %8 = vsyncpa [#allocation3], 0
    %s9 = scalar_lea.sflag [#allocation3], 1
    %10 = vsyncpa %s9, 0
    %11 = vsyncpa [#allocation6], 0
    %12 = vsyncpa [#allocation4], 0
    %s13 = scalar_lea.sflag [#allocation4], 1
    %14 = vsyncpa %s13, 0
    loop: start=0, step=1, limit=4
    $region2: #{tpu_custom_call.1} parent=1 // loop_pre_header
      _
    $region3: #{tpu_custom_call.1} parent=1 // loop_header
      %s16 = sphi 0, %s20
      %p17 = scmp.ge.s32.totalorder %s16, 4
      %s26 = sphi 0, %s28
      %s29 = sphi 0, %s26
      %s30 = sphi 0, %s29
      %s46 = sphi 0, %s30
      %s50 = sphi 0, %s50
      %s52 = sphi 0, %s50
      %s53 = sphi 0, %s52
      %s67 = sphi 0, %s53
      %s71 = sphi 0, %s71
      %s73 = sphi 0, %s71
      %s74 = sphi 0, %s73
      %s88 = sphi 0, %s74
      %s94 = sphi 0, %s96
      %s97 = sphi 0, %s94
      %s98 = sphi 0, %s97
      %s114 = sphi 0, %s98
    $region4: #{tpu_custom_call.1} parent=1 // loop_header_branch
      %19 = sbr.rel (%p17) target = $region8
    $region5: #{tpu_custom_call.1} parent=1 // loop_body
      %s21 = ssub.s32 %s16, 1
      %s22 = ssub.s32 %s16, 2
      %s23 = sadd.s32 %s16, 1
      %s24 = ssub.s32 %s16, %s23
      %p25 = scmp.eq.s32.totalorder %s24, 0
      %s27 = sadd.s32 %s26, 1
      %s28 = scalar_select %p25, %s26, %s27
      %p31 = pneg %p25
      %p32 = scmp.eq.s32.totalorder %s16, 1
      %p33 = por %p31, %p32
      %p34 = scmp.ne.s32.totalorder %s26, %s29
      %p35 = scmp.eq.s32.totalorder %s16, 0
      %p36 = por %p34, %p35
      %p37 = scmp.ne.s32.totalorder %s26, %s29
      %p38 = scmp.eq.s32.totalorder %s21, 1
      %p39 = por %p37, %p38
      %p40 = scmp.ne.s32.totalorder %s29, %s30
      %p41 = scmp.eq.s32.totalorder %s21, 0
      %p42 = por %p40, %p41
      %p43 = scmp.ne.s32.totalorder %s29, %s30
      %p44 = scmp.eq.s32.totalorder %s22, 1
      %p45 = por %p43, %p44
      %p47 = scmp.ne.s32.totalorder %s30, %s46
      %p48 = scmp.eq.s32.totalorder %s22, 0
      %p49 = por %p47, %p48
      %s51 = sadd.s32 %s50, 1
      %p54 = scmp.eq.s32.totalorder %s16, 1
      %p55 = scmp.ne.s32.totalorder %s50, %s52
      %p56 = scmp.eq.s32.totalorder %s16, 0
      %p57 = por %p55, %p56
      %p58 = scmp.ne.s32.totalorder %s50, %s52
      %p59 = scmp.eq.s32.totalorder %s21, 1
      %p60 = por %p58, %p59
      %p61 = scmp.ne.s32.totalorder %s52, %s53
      %p62 = scmp.eq.s32.totalorder %s21, 0
      %p63 = por %p61, %p62
      %p64 = scmp.ne.s32.totalorder %s52, %s53
      %p65 = scmp.eq.s32.totalorder %s22, 1
      %p66 = por %p64, %p65
      %p68 = scmp.ne.s32.totalorder %s53, %s67
      %p69 = scmp.eq.s32.totalorder %s22, 0
      %p70 = por %p68, %p69
      %s72 = sadd.s32 %s71, 1
      %p75 = scmp.eq.s32.totalorder %s16, 1
      %p76 = scmp.ne.s32.totalorder %s71, %s73
      %p77 = scmp.eq.s32.totalorder %s16, 0
      %p78 = por %p76, %p77
      %p79 = scmp.ne.s32.totalorder %s71, %s73
      %p80 = scmp.eq.s32.totalorder %s21, 1
      %p81 = por %p79, %p80
      %p82 = scmp.ne.s32.totalorder %s73, %s74
      %p83 = scmp.eq.s32.totalorder %s21, 0
      %p84 = por %p82, %p83
      %p85 = scmp.ne.s32.totalorder %s73, %s74
      %p86 = scmp.eq.s32.totalorder %s22, 1
      %p87 = por %p85, %p86
      %p89 = scmp.ne.s32.totalorder %s74, %s88
      %p90 = scmp.eq.s32.totalorder %s22, 0
      %p91 = por %p89, %p90
      %s92 = ssub.s32 %s16, %s23
      %p93 = scmp.eq.s32.totalorder %s92, 0
      %s95 = sadd.s32 %s94, 1
      %s96 = scalar_select %p93, %s94, %s95
      %p99 = pneg %p93
      %p100 = scmp.eq.s32.totalorder %s16, 1
      %p101 = por %p99, %p100
      %p102 = scmp.ne.s32.totalorder %s94, %s97
      %p103 = scmp.eq.s32.totalorder %s16, 0
      %p104 = por %p102, %p103
      %p105 = scmp.ne.s32.totalorder %s94, %s97
      %p106 = scmp.eq.s32.totalorder %s21, 1
      %p107 = por %p105, %p106
      %p108 = scmp.ne.s32.totalorder %s97, %s98
      %p109 = scmp.eq.s32.totalorder %s21, 0
      %p110 = por %p108, %p109
      %p111 = scmp.ne.s32.totalorder %s97, %s98
      %p112 = scmp.eq.s32.totalorder %s22, 1
      %p113 = por %p111, %p112
      %p115 = scmp.ne.s32.totalorder %s98, %s114
      %p116 = scmp.eq.s32.totalorder %s22, 0
      %p117 = por %p115, %p116
      %p118 = scmp.le.s32.totalorder 1, %s16
      %p119 = scmp.lt.s32.totalorder %s16, 3
      %p120 = pnand %p118, %p119
      %p121 = pneg %p120
      // Predicated region
      $region9: #{tpu_custom_call.1} parent=5 // pred_check
        _
      $region10: #{tpu_custom_call.1} parent=5 // pred_check_branch
        %123 = sbr.rel (%p120) target = $region12
      $region11: #{tpu_custom_call.1} parent=5 // pred_region
        %s124 = ssub.s32 %s16, 1
        // Predicated region
        $region13: #{tpu_custom_call.1} parent=11 // pred_check
          %p125 = pneg %p63
        $region14: #{tpu_custom_call.1} parent=11 // pred_check_branch
          %127 = sbr.rel (%p125) target = $region16
        $region15: #{tpu_custom_call.1} parent=11 // pred_region
          %s129 = ssub.s32 4096, 4096
          %130 = vsyncadd [#allocation6], %s129
          %s131 = sshll.u32 [#allocation5], 4
          %s132 = int_to_ptr.vmem [resolvable:$true] %s131
          %137 = dma.hbm_to_vmem [thread:$0]  %s1, 4096, %s132, [#allocation6], 128, 128, 8
        $region16: #{tpu_custom_call.1} parent=11 // pred_fallthru
          _
        // Predicated region
        $region17: #{tpu_custom_call.1} parent=11 // pred_check
          %p138 = pneg %p84
        $region18: #{tpu_custom_call.1} parent=11 // pred_check_branch
          %140 = sbr.rel (%p138) target = $region20
        $region19: #{tpu_custom_call.1} parent=11 // pred_region
          _
        $region20: #{tpu_custom_call.1} parent=11 // pred_fallthru
          _
      $region12: #{tpu_custom_call.1} parent=5 // pred_fallthru
        _
      %p141 = scmp.lt.s32.totalorder %s16, 2
      // Predicated region
      $region21: #{tpu_custom_call.1} parent=5 // pred_check
        %p142 = pneg %p141
      $region22: #{tpu_custom_call.1} parent=5 // pred_check_branch
        %144 = sbr.rel (%p142) target = $region24
      $region23: #{tpu_custom_call.1} parent=5 // pred_region
        // Predicated region
        $region25: #{tpu_custom_call.1} parent=23 // pred_check
          %p145 = pneg %p36
        $region26: #{tpu_custom_call.1} parent=23 // pred_check_branch
          %147 = sbr.rel (%p145) target = $region28
        $region27: #{tpu_custom_call.1} parent=23 // pred_region
          %s148 = sand.u32 %s26, 1
          %s149 = scalar_lea.sflag [#allocation3], %s148
          %s150 = sand.u32 %s26, 1
          %s151 = smul.addr %s150, 128
          %s152 = scalar_lea.vmem [#allocation2], %s151
          %s153 = smul.u32 16, %s16
          %s155 = ssub.s32 2048, 2048
          %156 = vsyncadd %s149, %s155
          %s157 = smul.addr %s153, 2
          %s158 = smul.addr %s157, 64
          %s159 = scalar_lea.hbm %s0, %s158
          %s160 = sshll.u32 %s152, 4
          %s161 = int_to_ptr.vmem [resolvable:$true] %s160
          %166 = dma.hbm_to_vmem [thread:$0]  %s159, 2048, %s161, %s149, 128, 128, 8
        $region28: #{tpu_custom_call.1} parent=23 // pred_fallthru
          _
      $region24: #{tpu_custom_call.1} parent=5 // pred_fallthru
        _
      %p167 = scmp.le.s32.totalorder 1, %s16
      %p168 = scmp.lt.s32.totalorder %s16, 3
      %p169 = pnand %p167, %p168
      %p170 = pneg %p169
      // Predicated region
      $region29: #{tpu_custom_call.1} parent=5 // pred_check
        _
      $region30: #{tpu_custom_call.1} parent=5 // pred_check_branch
        %172 = sbr.rel (%p169) target = $region32
      $region31: #{tpu_custom_call.1} parent=5 // pred_region
        %s173 = ssub.s32 %s16, 1
        %s174 = sand.u32 %s29, 1
        %s175 = scalar_lea.sflag [#allocation3], %s174
        %s176 = sand.u32 %s29, 1
        %s177 = smul.addr %s176, 128
        %s178 = scalar_lea.vmem [#allocation2], %s177
        // Predicated region
        $region33: #{tpu_custom_call.1} parent=31 // pred_check
          %p179 = pneg %p42
        $region34: #{tpu_custom_call.1} parent=31 // pred_check_branch
          %181 = sbr.rel (%p179) target = $region36
        $region35: #{tpu_custom_call.1} parent=31 // pred_region
          %182 = dma.done %s175, 2048
        $region36: #{tpu_custom_call.1} parent=31 // pred_fallthru
          _
        // Predicated region
        $region37: #{tpu_custom_call.1} parent=31 // pred_check
          %p183 = pneg %p63
        $region38: #{tpu_custom_call.1} parent=31 // pred_check_branch
          %185 = sbr.rel (%p183) target = $region40
        $region39: #{tpu_custom_call.1} parent=31 // pred_region
          %186 = dma.done [#allocation6], 4096
        $region40: #{tpu_custom_call.1} parent=31 // pred_fallthru
          _
        %s187 = sand.u32 %s29, 1
        %s188 = scalar_lea.sflag [#allocation3], %s187
        %s189 = sand.u32 %s29, 1
        %s190 = smul.addr %s189, 128
        %s191 = scalar_lea.vmem [#allocation2], %s190
        %p192 = pneg %p42
        %p193 = pneg %p39
        %p194 = pneg %p63
        %p195 = pneg %p60
        %p196 = pneg %p84
        %p197 = pneg %p81
        %p198 = pneg %p110
        %p199 = pneg %p107
        %s200 = sand.u32 %s97, 1
        %s201 = scalar_lea.sflag [#allocation4], %s200
        %s202 = sand.u32 %s97, 1
        %s203 = smul.addr %s202, 256
        %s204 = scalar_lea.vmem [#allocation7], %s203
        %s205 = smul.u32 16, %s21
        %s206 = smul.u32 16, %s21
        %v207 = vld [vmem:[%s178] sm:$0xff]
        %v208 = vld [vmem:[%s178 + $0x8] sm:$0xff]
        %v209 = vld [vmem:[%s178 + $0x10] sm:$0xff]
        %v210 = vld [vmem:[%s178 + $0x18] sm:$0xff]
        %v211 = vld [vmem:[%s178 + $0x20] sm:$0xff]
        %v212 = vld [vmem:[%s178 + $0x28] sm:$0xff]
        %v213 = vld [vmem:[%s178 + $0x30] sm:$0xff]
        %v214 = vld [vmem:[%s178 + $0x38] sm:$0xff]
        %v215 = vld [vmem:[%s178 + $0x40] sm:$0xff]
        %v216 = vld [vmem:[%s178 + $0x48] sm:$0xff]
        %v217 = vld [vmem:[%s178 + $0x50] sm:$0xff]
        %v218 = vld [vmem:[%s178 + $0x58] sm:$0xff]
        %v219 = vld [vmem:[%s178 + $0x60] sm:$0xff]
        %v220 = vld [vmem:[%s178 + $0x68] sm:$0xff]
        %v221 = vld [vmem:[%s178 + $0x70] sm:$0xff]
        %v222 = vld [vmem:[%s178 + $0x78] sm:$0xff]
        %v223 = vld [vmem:[#allocation5] sm:$0xff]
        %v224 = vld [vmem:[#allocation5 + $0x8] sm:$0xff]
        %v225 = vld [vmem:[#allocation5 + $0x10] sm:$0xff]
        %v226 = vld [vmem:[#allocation5 + $0x18] sm:$0xff]
        %v227 = vld [vmem:[#allocation5 + $0x20] sm:$0xff]
        %v228 = vld [vmem:[#allocation5 + $0x28] sm:$0xff]
        %v229 = vld [vmem:[#allocation5 + $0x30] sm:$0xff]
        %v230 = vld [vmem:[#allocation5 + $0x38] sm:$0xff]
        %v231 = vld [vmem:[#allocation5 + $0x40] sm:$0xff]
        %v232 = vld [vmem:[#allocation5 + $0x48] sm:$0xff]
        %v233 = vld [vmem:[#allocation5 + $0x50] sm:$0xff]
        %v234 = vld [vmem:[#allocation5 + $0x58] sm:$0xff]
        %v235 = vld [vmem:[#allocation5 + $0x60] sm:$0xff]
        %v236 = vld [vmem:[#allocation5 + $0x68] sm:$0xff]
        %v237 = vld [vmem:[#allocation5 + $0x70] sm:$0xff]
        %v238 = vld [vmem:[#allocation5 + $0x78] sm:$0xff]
        %v239 = vld [vmem:[#allocation5 + $0x80] sm:$0xff]
        %v240 = vld [vmem:[#allocation5 + $0x88] sm:$0xff]
        %v241 = vld [vmem:[#allocation5 + $0x90] sm:$0xff]
        %v242 = vld [vmem:[#allocation5 + $0x98] sm:$0xff]
        %v243 = vld [vmem:[#allocation5 + $0xa0] sm:$0xff]
        %v244 = vld [vmem:[#allocation5 + $0xa8] sm:$0xff]
        %v245 = vld [vmem:[#allocation5 + $0xb0] sm:$0xff]
        %v246 = vld [vmem:[#allocation5 + $0xb8] sm:$0xff]
        %v247 = vld [vmem:[#allocation5 + $0xc0] sm:$0xff]
        %v248 = vld [vmem:[#allocation5 + $0xc8] sm:$0xff]
        %v249 = vld [vmem:[#allocation5 + $0xd0] sm:$0xff]
        %v250 = vld [vmem:[#allocation5 + $0xd8] sm:$0xff]
        %v251 = vld [vmem:[#allocation5 + $0xe0] sm:$0xff]
        %v252 = vld [vmem:[#allocation5 + $0xe8] sm:$0xff]
        %v253 = vld [vmem:[#allocation5 + $0xf0] sm:$0xff]
        %v254 = vld [vmem:[#allocation5 + $0xf8] sm:$0xff]
        %v271 = vunpack.c.l.b16 %v207
        %v272 = vunpack.c.h.b16 %v207
        %v273 = vunpack.c.l.b16 %v208
        %v274 = vunpack.c.h.b16 %v208
        %v275 = vunpack.c.l.b16 %v209
        %v276 = vunpack.c.h.b16 %v209
        %v277 = vunpack.c.l.b16 %v210
        %v278 = vunpack.c.h.b16 %v210
        %v279 = vunpack.c.l.b16 %v211
        %v280 = vunpack.c.h.b16 %v211
        %v281 = vunpack.c.l.b16 %v212
        %v282 = vunpack.c.h.b16 %v212
        %v283 = vunpack.c.l.b16 %v213
        %v284 = vunpack.c.h.b16 %v213
        %v285 = vunpack.c.l.b16 %v214
        %v286 = vunpack.c.h.b16 %v214
        %v287 = vunpack.c.l.b16 %v215
        %v288 = vunpack.c.h.b16 %v215
        %v289 = vunpack.c.l.b16 %v216
        %v290 = vunpack.c.h.b16 %v216
        %v291 = vunpack.c.l.b16 %v217
        %v292 = vunpack.c.h.b16 %v217
        %v293 = vunpack.c.l.b16 %v218
        %v294 = vunpack.c.h.b16 %v218
        %v295 = vunpack.c.l.b16 %v219
        %v296 = vunpack.c.h.b16 %v219
        %v297 = vunpack.c.l.b16 %v220
        %v298 = vunpack.c.h.b16 %v220
        %v299 = vunpack.c.l.b16 %v221
        %v300 = vunpack.c.h.b16 %v221
        %v301 = vunpack.c.l.b16 %v222
        %v302 = vunpack.c.h.b16 %v222
        %v303 = vpack.c.b16 %v273, %v271
        %v304 = vpack.c.b16 %v274, %v272
        %v305 = vpack.c.b16 %v277, %v275
        %v306 = vpack.c.b16 %v278, %v276
        %v307 = vpack.c.b16 %v281, %v279
        %v308 = vpack.c.b16 %v282, %v280
        %v309 = vpack.c.b16 %v285, %v283
        %v310 = vpack.c.b16 %v286, %v284
        %v311 = vpack.c.b16 %v289, %v287
        %v312 = vpack.c.b16 %v290, %v288
        %v313 = vpack.c.b16 %v293, %v291
        %v314 = vpack.c.b16 %v294, %v292
        %v315 = vpack.c.b16 %v297, %v295
        %v316 = vpack.c.b16 %v298, %v296
        %v317 = vpack.c.b16 %v301, %v299
        %v318 = vpack.c.b16 %v302, %v300
        %v367 = vunpack.c.l.b16 %v223
        %v368 = vunpack.c.h.b16 %v223
        %v369 = vunpack.c.l.b16 %v224
        %v370 = vunpack.c.h.b16 %v224
        %v371 = vunpack.c.l.b16 %v225
        %v372 = vunpack.c.h.b16 %v225
        %v373 = vunpack.c.l.b16 %v226
        %v374 = vunpack.c.h.b16 %v226
        %v375 = vunpack.c.l.b16 %v227
        %v376 = vunpack.c.h.b16 %v227
        %v377 = vunpack.c.l.b16 %v228
        %v378 = vunpack.c.h.b16 %v228
        %v379 = vunpack.c.l.b16 %v229
        %v380 = vunpack.c.h.b16 %v229
        %v381 = vunpack.c.l.b16 %v230
        %v382 = vunpack.c.h.b16 %v230
        %v383 = vunpack.c.l.b16 %v231
        %v384 = vunpack.c.h.b16 %v231
        %v385 = vunpack.c.l.b16 %v232
        %v386 = vunpack.c.h.b16 %v232
        %v387 = vunpack.c.l.b16 %v233
        %v388 = vunpack.c.h.b16 %v233
        %v389 = vunpack.c.l.b16 %v234
        %v390 = vunpack.c.h.b16 %v234
        %v391 = vunpack.c.l.b16 %v235
        %v392 = vunpack.c.h.b16 %v235
        %v393 = vunpack.c.l.b16 %v236
        %v394 = vunpack.c.h.b16 %v236
        %v395 = vunpack.c.l.b16 %v237
        %v396 = vunpack.c.h.b16 %v237
        %v397 = vunpack.c.l.b16 %v238
        %v398 = vunpack.c.h.b16 %v238
        %v399 = vunpack.c.l.b16 %v239
        %v400 = vunpack.c.h.b16 %v239
        %v401 = vunpack.c.l.b16 %v240
        %v402 = vunpack.c.h.b16 %v240
        %v403 = vunpack.c.l.b16 %v241
        %v404 = vunpack.c.h.b16 %v241
        %v405 = vunpack.c.l.b16 %v242
        %v406 = vunpack.c.h.b16 %v242
        %v407 = vunpack.c.l.b16 %v243
        %v408 = vunpack.c.h.b16 %v243
        %v409 = vunpack.c.l.b16 %v244
        %v410 = vunpack.c.h.b16 %v244
        %v411 = vunpack.c.l.b16 %v245
        %v412 = vunpack.c.h.b16 %v245
        %v413 = vunpack.c.l.b16 %v246
        %v414 = vunpack.c.h.b16 %v246
        %v415 = vunpack.c.l.b16 %v247
        %v416 = vunpack.c.h.b16 %v247
        %v417 = vunpack.c.l.b16 %v248
        %v418 = vunpack.c.h.b16 %v248
        %v419 = vunpack.c.l.b16 %v249
        %v420 = vunpack.c.h.b16 %v249
        %v421 = vunpack.c.l.b16 %v250
        %v422 = vunpack.c.h.b16 %v250
        %v423 = vunpack.c.l.b16 %v251
        %v424 = vunpack.c.h.b16 %v251
        %v425 = vunpack.c.l.b16 %v252
        %v426 = vunpack.c.h.b16 %v252
        %v427 = vunpack.c.l.b16 %v253
        %v428 = vunpack.c.h.b16 %v253
        %v429 = vunpack.c.l.b16 %v254
        %v430 = vunpack.c.h.b16 %v254
        %v431 = vpack.c.b16 %v369, %v367
        %v432 = vpack.c.b16 %v370, %v368
        %v433 = vpack.c.b16 %v373, %v371
        %v434 = vpack.c.b16 %v374, %v372
        %v435 = vpack.c.b16 %v377, %v375
        %v436 = vpack.c.b16 %v378, %v376
        %v437 = vpack.c.b16 %v381, %v379
        %v438 = vpack.c.b16 %v382, %v380
        %v439 = vpack.c.b16 %v385, %v383
        %v440 = vpack.c.b16 %v386, %v384
        %v441 = vpack.c.b16 %v389, %v387
        %v442 = vpack.c.b16 %v390, %v388
        %v443 = vpack.c.b16 %v393, %v391
        %v444 = vpack.c.b16 %v394, %v392
        %v445 = vpack.c.b16 %v397, %v395
        %v446 = vpack.c.b16 %v398, %v396
        %v447 = vpack.c.b16 %v401, %v399
        %v448 = vpack.c.b16 %v402, %v400
        %v449 = vpack.c.b16 %v405, %v403
        %v450 = vpack.c.b16 %v406, %v404
        %v451 = vpack.c.b16 %v409, %v407
        %v452 = vpack.c.b16 %v410, %v408
        %v453 = vpack.c.b16 %v413, %v411
        %v454 = vpack.c.b16 %v414, %v412
        %v455 = vpack.c.b16 %v417, %v415
        %v456 = vpack.c.b16 %v418, %v416
        %v457 = vpack.c.b16 %v421, %v419
        %v458 = vpack.c.b16 %v422, %v420
        %v459 = vpack.c.b16 %v425, %v423
        %v460 = vpack.c.b16 %v426, %v424
        %v461 = vpack.c.b16 %v429, %v427
        %v462 = vpack.c.b16 %v430, %v428
        %495 = vmatprep.subr.bf16.mxu0 %v432
        %496 = vmatpush1.bf16.msra.mxu0 %v431
        %497 = vmatprep.subr.bf16.mxu0 %v434
        %498 = vmatpush1.bf16.msra.mxu0 %v433
        %499 = vmatprep.subr.bf16.mxu0 %v436
        %500 = vmatpush1.bf16.msra.mxu0 %v435
        %501 = vmatprep.subr.bf16.mxu0 %v438
        %502 = vmatpush1.bf16.msra.mxu0 %v437
        %503 = vmatprep.subr.bf16.mxu0 %v440
        %504 = vmatpush1.bf16.msra.mxu0 %v439
        %505 = vmatprep.subr.bf16.mxu0 %v442
        %506 = vmatpush1.bf16.msra.mxu0 %v441
        %507 = vmatprep.subr.bf16.mxu0 %v444
        %508 = vmatpush1.bf16.msra.mxu0 %v443
        %509 = vmatprep.subr.bf16.mxu0 %v446
        %510 = vmatpush1.bf16.msra.mxu0 %v445
        %511 = vmatprep.subr.bf16.mxu0 %v448
        %512 = vmatpush1.bf16.msra.mxu0 %v447
        %513 = vmatprep.subr.bf16.mxu0 %v450
        %514 = vmatpush1.bf16.msra.mxu0 %v449
        %515 = vmatprep.subr.bf16.mxu0 %v452
        %516 = vmatpush1.bf16.msra.mxu0 %v451
        %517 = vmatprep.subr.bf16.mxu0 %v454
        %518 = vmatpush1.bf16.msra.mxu0 %v453
        %519 = vmatprep.subr.bf16.mxu0 %v456
        %520 = vmatpush1.bf16.msra.mxu0 %v455
        %521 = vmatprep.subr.bf16.mxu0 %v458
        %522 = vmatpush1.bf16.msra.mxu0 %v457
        %523 = vmatprep.subr.bf16.mxu0 %v460
        %524 = vmatpush1.bf16.msra.mxu0 %v459
        %525 = vmatprep.subr.bf16.mxu0 %v462
        %526 = vmatpush1.bf16.msra.mxu0 %v461
        %527 = vmatprep.mubr.bf16.mxu0 %v304
        %528 = vmatmul.mubr.bf16.gmra.mrb[0].mxu0 %v303
        %v529 = vpop.f32.mrb[0].mxu0
        %v530 = vadd.f32 0.0, %v529
        %v531 = vpop.f32.mrb[0].mxu0
        %v532 = vadd.f32 0.0, %v531
        %v533 = vpop.f32.mrb[0].mxu0
        %v534 = vadd.f32 0.0, %v533
        %v535 = vpop.f32.mrb[0].mxu0
        %v536 = vadd.f32 0.0, %v535
        %537 = vmatprep.mubr.bf16.mxu0 %v306
        %538 = vmatmul.mubr.bf16.gmra.mrb[0].mxu0 %v305
        %v539 = vpop.f32.mrb[0].mxu0
        %v540 = vadd.f32 0.0, %v539
        %v541 = vpop.f32.mrb[0].mxu0
        %v542 = vadd.f32 0.0, %v541
        %v543 = vpop.f32.mrb[0].mxu0
        %v544 = vadd.f32 0.0, %v543
        %v545 = vpop.f32.mrb[0].mxu0
        %v546 = vadd.f32 0.0, %v545
        %547 = vmatprep.mubr.bf16.mxu0 %v308
        %548 = vmatmul.mubr.bf16.gmra.mrb[0].mxu0 %v307
        %v549 = vpop.f32.mrb[0].mxu0
        %v550 = vadd.f32 0.0, %v549
        %v551 = vpop.f32.mrb[0].mxu0
        %v552 = vadd.f32 0.0, %v551
        %v553 = vpop.f32.mrb[0].mxu0
        %v554 = vadd.f32 0.0, %v553
        %v555 = vpop.f32.mrb[0].mxu0
        %v556 = vadd.f32 0.0, %v555
        %557 = vmatprep.mubr.bf16.mxu0 %v310
        %558 = vmatmul.mubr.bf16.gmra.mrb[0].mxu0 %v309
        %v559 = vpop.f32.mrb[0].mxu0
        %v560 = vadd.f32 0.0, %v559
        %v561 = vpop.f32.mrb[0].mxu0
        %v562 = vadd.f32 0.0, %v561
        %v563 = vpop.f32.mrb[0].mxu0
        %v564 = vadd.f32 0.0, %v563
        %v565 = vpop.f32.mrb[0].mxu0
        %v566 = vadd.f32 0.0, %v565
        %567 = vmatprep.mubr.bf16.mxu0 %v312
        %568 = vmatmul.mubr.bf16.gmra.mrb[0].mxu0 %v311
        %v569 = vpop.f32.mrb[0].mxu0
        %v570 = vadd.f32 0.0, %v569
        %v571 = vpop.f32.mrb[0].mxu0
        %v572 = vadd.f32 0.0, %v571
        %v573 = vpop.f32.mrb[0].mxu0
        %v574 = vadd.f32 0.0, %v573
        %v575 = vpop.f32.mrb[0].mxu0
        %v576 = vadd.f32 0.0, %v575
        %577 = vmatprep.mubr.bf16.mxu0 %v314
        %578 = vmatmul.mubr.bf16.gmra.mrb[0].mxu0 %v313
        %v579 = vpop.f32.mrb[0].mxu0
        %v580 = vadd.f32 0.0, %v579
        %v581 = vpop.f32.mrb[0].mxu0
        %v582 = vadd.f32 0.0, %v581
        %v583 = vpop.f32.mrb[0].mxu0
        %v584 = vadd.f32 0.0, %v583
        %v585 = vpop.f32.mrb[0].mxu0
        %v586 = vadd.f32 0.0, %v585
        %587 = vmatprep.mubr.bf16.mxu0 %v316
        %588 = vmatmul.mubr.bf16.gmra.mrb[0].mxu0 %v315
        %v589 = vpop.f32.mrb[0].mxu0
        %v590 = vadd.f32 0.0, %v589
        %v591 = vpop.f32.mrb[0].mxu0
        %v592 = vadd.f32 0.0, %v591
        %v593 = vpop.f32.mrb[0].mxu0
        %v594 = vadd.f32 0.0, %v593
        %v595 = vpop.f32.mrb[0].mxu0
        %v596 = vadd.f32 0.0, %v595
        %597 = vmatprep.mubr.bf16.mxu0 %v318
        %598 = vmatmul.mubr.bf16.gmra.mrb[0].mxu0 %v317
        %v599 = vpop.f32.mrb[0].mxu0
        %v600 = vadd.f32 0.0, %v599
        %v601 = vpop.f32.mrb[0].mxu0
        %v602 = vadd.f32 0.0, %v601
        %v603 = vpop.f32.mrb[0].mxu0
        %v604 = vadd.f32 0.0, %v603
        %v605 = vpop.f32.mrb[0].mxu0
        %v606 = vadd.f32 0.0, %v605
        %607 = vdwg.mxu0
        %v608 = vmul.f32 %v530, %v530
        %v609 = vmul.f32 %v532, %v532
        %v610 = vmul.f32 %v534, %v534
        %v611 = vmul.f32 %v536, %v536
        %v612 = vmul.f32 %v540, %v540
        %v613 = vmul.f32 %v542, %v542
        %v614 = vmul.f32 %v544, %v544
        %v615 = vmul.f32 %v546, %v546
        %v616 = vmul.f32 %v550, %v550
        %v617 = vmul.f32 %v552, %v552
        %v618 = vmul.f32 %v554, %v554
        %v619 = vmul.f32 %v556, %v556
        %v620 = vmul.f32 %v560, %v560
        %v621 = vmul.f32 %v562, %v562
        %v622 = vmul.f32 %v564, %v564
        %v623 = vmul.f32 %v566, %v566
        %v624 = vmul.f32 %v570, %v570
        %v625 = vmul.f32 %v572, %v572
        %v626 = vmul.f32 %v574, %v574
        %v627 = vmul.f32 %v576, %v576
        %v628 = vmul.f32 %v580, %v580
        %v629 = vmul.f32 %v582, %v582
        %v630 = vmul.f32 %v584, %v584
        %v631 = vmul.f32 %v586, %v586
        %v632 = vmul.f32 %v590, %v590
        %v633 = vmul.f32 %v592, %v592
        %v634 = vmul.f32 %v594, %v594
        %v635 = vmul.f32 %v596, %v596
        %v636 = vmul.f32 %v600, %v600
        %v637 = vmul.f32 %v602, %v602
        %v638 = vmul.f32 %v604, %v604
        %v639 = vmul.f32 %v606, %v606
        %v640 = vadd.f32 %v608, %v609
        %641 = vadd.xlane.f32.xlu0 %v640
        %v642 = vpop.xlane.xlu0 %641
        %v643 = vadd.f32 %v610, %v611
        %644 = vadd.xlane.f32.xlu0 %v643
        %v645 = vpop.xlane.xlu0 %644
        %v646 = vadd.f32 %v612, %v613
        %647 = vadd.xlane.f32.xlu0 %v646
        %v648 = vpop.xlane.xlu0 %647
        %v649 = vadd.f32 %v614, %v615
        %650 = vadd.xlane.f32.xlu0 %v649
        %v651 = vpop.xlane.xlu0 %650
        %v652 = vadd.f32 %v616, %v617
        %653 = vadd.xlane.f32.xlu0 %v652
        %v654 = vpop.xlane.xlu0 %653
        %v655 = vadd.f32 %v618, %v619
        %656 = vadd.xlane.f32.xlu0 %v655
        %v657 = vpop.xlane.xlu0 %656
        %v658 = vadd.f32 %v620, %v621
        %659 = vadd.xlane.f32.xlu0 %v658
        %v660 = vpop.xlane.xlu0 %659
        %v661 = vadd.f32 %v622, %v623
        %662 = vadd.xlane.f32.xlu0 %v661
        %v663 = vpop.xlane.xlu0 %662
        %v664 = vadd.f32 %v624, %v625
        %665 = vadd.xlane.f32.xlu0 %v664
        %v666 = vpop.xlane.xlu0 %665
        %v667 = vadd.f32 %v626, %v627
        %668 = vadd.xlane.f32.xlu0 %v667
        %v669 = vpop.xlane.xlu0 %668
        %v670 = vadd.f32 %v628, %v629
        %671 = vadd.xlane.f32.xlu0 %v670
        %v672 = vpop.xlane.xlu0 %671
        %v673 = vadd.f32 %v630, %v631
        %674 = vadd.xlane.f32.xlu0 %v673
        %v675 = vpop.xlane.xlu0 %674
        %v676 = vadd.f32 %v632, %v633
        %677 = vadd.xlane.f32.xlu0 %v676
        %v678 = vpop.xlane.xlu0 %677
        %v679 = vadd.f32 %v634, %v635
        %680 = vadd.xlane.f32.xlu0 %v679
        %v681 = vpop.xlane.xlu0 %680
        %v682 = vadd.f32 %v636, %v637
        %683 = vadd.xlane.f32.xlu0 %v682
        %v684 = vpop.xlane.xlu0 %683
        %v685 = vadd.f32 %v638, %v639
        %686 = vadd.xlane.f32.xlu0 %v685
        %v687 = vpop.xlane.xlu0 %686
        %v688 = vmax.f32 %v642, 1e-24
        %v689 = vmax.f32 %v645, 1e-24
        %v690 = vmax.f32 %v648, 1e-24
        %v691 = vmax.f32 %v651, 1e-24
        %v692 = vmax.f32 %v654, 1e-24
        %v693 = vmax.f32 %v657, 1e-24
        %v694 = vmax.f32 %v660, 1e-24
        %v695 = vmax.f32 %v663, 1e-24
        %v696 = vmax.f32 %v666, 1e-24
        %v697 = vmax.f32 %v669, 1e-24
        %v698 = vmax.f32 %v672, 1e-24
        %v699 = vmax.f32 %v675, 1e-24
        %v700 = vmax.f32 %v678, 1e-24
        %v701 = vmax.f32 %v681, 1e-24
        %v702 = vmax.f32 %v684, 1e-24
        %v703 = vmax.f32 %v687, 1e-24
        %v704 = vrsqrt.pop %v688
        %v705 = vrsqrt.pop %v689
        %v706 = vrsqrt.pop %v690
        %v707 = vrsqrt.pop %v691
        %v708 = vrsqrt.pop %v692
        %v709 = vrsqrt.pop %v693
        %v710 = vrsqrt.pop %v694
        %v711 = vrsqrt.pop %v695
        %v712 = vrsqrt.pop %v696
        %v713 = vrsqrt.pop %v697
        %v714 = vrsqrt.pop %v698
        %v715 = vrsqrt.pop %v699
        %v716 = vrsqrt.pop %v700
        %v717 = vrsqrt.pop %v701
        %v718 = vrsqrt.pop %v702
        %v719 = vrsqrt.pop %v703
        %v720 = vmul.f32 %v530, %v704
        %v721 = vmul.f32 %v532, %v704
        %v722 = vmul.f32 %v534, %v705
        %v723 = vmul.f32 %v536, %v705
        %v724 = vmul.f32 %v540, %v706
        %v725 = vmul.f32 %v542, %v706
        %v726 = vmul.f32 %v544, %v707
        %v727 = vmul.f32 %v546, %v707
        %v728 = vmul.f32 %v550, %v708
        %v729 = vmul.f32 %v552, %v708
        %v730 = vmul.f32 %v554, %v709
        %v731 = vmul.f32 %v556, %v709
        %v732 = vmul.f32 %v560, %v710
        %v733 = vmul.f32 %v562, %v710
        %v734 = vmul.f32 %v564, %v711
        %v735 = vmul.f32 %v566, %v711
        %v736 = vmul.f32 %v570, %v712
        %v737 = vmul.f32 %v572, %v712
        %v738 = vmul.f32 %v574, %v713
        %v739 = vmul.f32 %v576, %v713
        %v740 = vmul.f32 %v580, %v714
        %v741 = vmul.f32 %v582, %v714
        %v742 = vmul.f32 %v584, %v715
        %v743 = vmul.f32 %v586, %v715
        %v744 = vmul.f32 %v590, %v716
        %v745 = vmul.f32 %v592, %v716
        %v746 = vmul.f32 %v594, %v717
        %v747 = vmul.f32 %v596, %v717
        %v748 = vmul.f32 %v600, %v718
        %v749 = vmul.f32 %v602, %v718
        %v750 = vmul.f32 %v604, %v719
        %v751 = vmul.f32 %v606, %v719
        %752 = vst [vmem:[%s204] sm:$0xff] %v720
        %753 = vst [vmem:[%s204 + $0x8] sm:$0xff] %v721
        %754 = vst [vmem:[%s204 + $0x10] sm:$0xff] %v722
        %755 = vst [vmem:[%s204 + $0x18] sm:$0xff] %v723
        %756 = vst [vmem:[%s204 + $0x20] sm:$0xff] %v724
        %757 = vst [vmem:[%s204 + $0x28] sm:$0xff] %v725
        %758 = vst [vmem:[%s204 + $0x30] sm:$0xff] %v726
        %759 = vst [vmem:[%s204 + $0x38] sm:$0xff] %v727
        %760 = vst [vmem:[%s204 + $0x40] sm:$0xff] %v728
        %761 = vst [vmem:[%s204 + $0x48] sm:$0xff] %v729
        %762 = vst [vmem:[%s204 + $0x50] sm:$0xff] %v730
        %763 = vst [vmem:[%s204 + $0x58] sm:$0xff] %v731
        %764 = vst [vmem:[%s204 + $0x60] sm:$0xff] %v732
        %765 = vst [vmem:[%s204 + $0x68] sm:$0xff] %v733
        %766 = vst [vmem:[%s204 + $0x70] sm:$0xff] %v734
        %767 = vst [vmem:[%s204 + $0x78] sm:$0xff] %v735
        %768 = vst [vmem:[%s204 + $0x80] sm:$0xff] %v736
        %769 = vst [vmem:[%s204 + $0x88] sm:$0xff] %v737
        %770 = vst [vmem:[%s204 + $0x90] sm:$0xff] %v738
        %771 = vst [vmem:[%s204 + $0x98] sm:$0xff] %v739
        %772 = vst [vmem:[%s204 + $0xa0] sm:$0xff] %v740
        %773 = vst [vmem:[%s204 + $0xa8] sm:$0xff] %v741
        %774 = vst [vmem:[%s204 + $0xb0] sm:$0xff] %v742
        %775 = vst [vmem:[%s204 + $0xb8] sm:$0xff] %v743
        %776 = vst [vmem:[%s204 + $0xc0] sm:$0xff] %v744
        %777 = vst [vmem:[%s204 + $0xc8] sm:$0xff] %v745
        %778 = vst [vmem:[%s204 + $0xd0] sm:$0xff] %v746
        %779 = vst [vmem:[%s204 + $0xd8] sm:$0xff] %v747
        %780 = vst [vmem:[%s204 + $0xe0] sm:$0xff] %v748
        %781 = vst [vmem:[%s204 + $0xe8] sm:$0xff] %v749
        %782 = vst [vmem:[%s204 + $0xf0] sm:$0xff] %v750
        %783 = vst [vmem:[%s204 + $0xf8] sm:$0xff] %v751
        %p784 = scmp.eq.s32.totalorder %s21, 1
        // Predicated region
        $region41: #{tpu_custom_call.1} parent=31 // pred_check
          %p785 = pneg %p784
        $region42: #{tpu_custom_call.1} parent=31 // pred_check_branch
          %787 = sbr.rel (%p785) target = $region44
        $region43: #{tpu_custom_call.1} parent=31 // pred_region
          %v788 = vld [vmem:[%s2] sm:$0x3]
          %v789 = vmul.f32 %v788, %v788
          %v791 = vlaneseq
          %v792 = vshrl.u32 %v791, 7
          %v793 = vsub.s32 0, %v792
          %v794 = vrot.slane %v789, %v793
          %v795 = vlaneseq
          %v796 = vshrl.u32 %v795, 7
          %v797 = vsub.s32 1, %v796
          %v798 = vrot.slane %v789, %v797
          %vm801 = vcmask 1040384
          %v802 = vsel %vm801, %v794, 0.0
          %v803 = vsel %vm801, %v798, 0.0
          %v804 = vadd.f32 %v802, %v803
          %805 = vadd.xlane.f32.xlu0 %v804
          %v806 = vpop.xlane.xlu0 %805
          %v807 = vmax.f32 %v806, 1e-24
          %v808 = vrsqrt.pop %v807
          %v810 = vlaneseq
          %v811 = vshrl.u32 %v810, 7
          %v812 = vsub.s32 0, %v811
          %v813 = vrot.slane %v808, %v812
          %v815 = vmul.f32 %v788, %v813
          %v816 = vlaneseq
          %vm817 = vcmp.ge.s32.totalorder %v816, 0
          %vm818 = vcmp.lt.s32.totalorder %v816, 256
          %vm819 = vmand %vm817, %vm818
          %s820 = scalar_lea.vmem %s204, 38 [#allocation7]
          %821 = vst.msk [vmem:[%s820] ss:$8 sm:$0x3] %vm819, %v815
          %822 = vst.msk [vmem:[%s820] ss:$8 sm:$0x0] %vm819, %v815
        $region44: #{tpu_custom_call.1} parent=31 // pred_fallthru
          _
        %s823 = sand.u32 %s97, 1
        %s824 = scalar_lea.sflag [#allocation4], %s823
        %s825 = sand.u32 %s97, 1
        %s826 = smul.addr %s825, 256
        %s827 = scalar_lea.vmem [#allocation7], %s826
        // Predicated region
        $region45: #{tpu_custom_call.1} parent=31 // pred_check
          %p828 = pneg %p107
        $region46: #{tpu_custom_call.1} parent=31 // pred_check_branch
          %830 = sbr.rel (%p828) target = $region48
        $region47: #{tpu_custom_call.1} parent=31 // pred_region
          %s831 = smul.u32 16, %s21
          %s833 = ssub.s32 4096, 4096
          %834 = vsyncadd %s824, %s833
          %s835 = smul.addr %s831, 2
          %s836 = smul.addr %s835, 128
          %s837 = scalar_lea.hbm %s3, %s836
          %s838 = sshll.u32 %s827, 4
          %s839 = int_to_ptr.vmem [resolvable:$true] %s838
          %844 = dma.vmem_to_hbm [thread:$0]  %s839, 4096, %s837, %s824, 256, 256, 16
        $region48: #{tpu_custom_call.1} parent=31 // pred_fallthru
          _
      $region32: #{tpu_custom_call.1} parent=5 // pred_fallthru
        _
      %p845 = scmp.le.s32.totalorder 2, %s16
      // Predicated region
      $region49: #{tpu_custom_call.1} parent=5 // pred_check
        %p846 = pneg %p845
      $region50: #{tpu_custom_call.1} parent=5 // pred_check_branch
        %848 = sbr.rel (%p846) target = $region52
      $region51: #{tpu_custom_call.1} parent=5 // pred_region
        %s849 = ssub.s32 %s16, 2
        // Predicated region
        $region53: #{tpu_custom_call.1} parent=51 // pred_check
          %p850 = pneg %p113
        $region54: #{tpu_custom_call.1} parent=51 // pred_check_branch
          %852 = sbr.rel (%p850) target = $region56
        $region55: #{tpu_custom_call.1} parent=51 // pred_region
          %s853 = sand.u32 %s98, 1
          %s854 = scalar_lea.sflag [#allocation4], %s853
          %s855 = sand.u32 %s98, 1
          %s856 = smul.addr %s855, 256
          %s857 = scalar_lea.vmem [#allocation7], %s856
          %858 = dma.done %s854, 4096
        $region56: #{tpu_custom_call.1} parent=51 // pred_fallthru
          _
      $region52: #{tpu_custom_call.1} parent=5 // pred_fallthru
        _
    $region6: #{tpu_custom_call.1} parent=1 // loop_footer
      %s20 = sadd.s32 1, %s16
    $region7: #{tpu_custom_call.1} parent=1 // loop_footer_branch
      %15 = sbr.rel target = $region3
    $region8: #{tpu_custom_call.1} parent=1 // loop_exit
      _
    %859 = vsyncpa [#allocation3], 1
    %s860 = scalar_lea.sflag [#allocation3], 1
    %861 = vsyncpa %s860, 1
    %862 = vsyncpa [#allocation6], 1
    %863 = vsyncpa [#allocation4], 1
    %s864 = scalar_lea.sflag [#allocation4], 1
    %865 = vsyncpa %s864, 1

</llo_original>
